<compile_context>
chip_gen: v5e
topology: v5e:2x2
jax: 0.10.0
libtpu: 0.0.40
codegen_flags: <defaults>
</compile_context>

<pallas_src>
import functools

import jax
import jax.numpy as jnp
from jax.experimental import pallas as pl
from jax.experimental.pallas import tpu as pltpu

NEG_INF = -1e30
VMEM_LIMIT = 32 * 1024 * 1024  # explicit scoped-VMEM limit (raises v5e default)


def _round_up(x, m):
    return ((x + m - 1) // m) * m


# --------------------------------------------------------------------------
# Kernel 1: word-embedding projection (no bias) + 2 highway layers.
# Row-tiled ("parallel"); transform+gate fused into one (H, 2H) matmul/layer.
# --------------------------------------------------------------------------
def _emb_hwy_kernel(x_ref, wp_ref, wtg0_ref, btg0_ref, wtg1_ref, btg1_ref,
                    o_ref):
    H = o_ref.shape[-1]
    x = jnp.dot(x_ref[...], wp_ref[...], preferred_element_type=jnp.float32)
    for w_ref, b_ref in ((wtg0_ref, btg0_ref), (wtg1_ref, btg1_ref)):
        tg = jnp.dot(x, w_ref[...],
                     preferred_element_type=jnp.float32) + b_ref[...]
        t = jax.nn.relu(tg[:, :H])          # transform half
        g = jax.nn.sigmoid(tg[:, H:])       # gate half
        x = g * t + (1.0 - g) * x
    o_ref[...] = x


def emb_proj_highway(x2d, p):
    """x2d: (N, E) rows -> (N, H). Context and question rows share one call."""
    N, E = x2d.shape
    H = p["w_proj"].shape[1]
    RT = 256
    if N < RT:
        RT = max(8, _round_up(N, 8))
    Np = _round_up(N, RT)
    if Np != N:
        x2d = jnp.pad(x2d, ((0, Np - N), (0, 0)))
    const = lambda i: (0, 0)
    out = pl.pallas_call(
        _emb_hwy_kernel,
        out_shape=jax.ShapeDtypeStruct((Np, H), jnp.float32),
        grid=(Np // RT,),
        in_specs=[
            pl.BlockSpec((RT, E), lambda i: (i, 0)),
            pl.BlockSpec((E, H), const),
            pl.BlockSpec((H, 2 * H), const), pl.BlockSpec((1, 2 * H), const),
            pl.BlockSpec((H, 2 * H), const), pl.BlockSpec((1, 2 * H), const),
        ],
        out_specs=pl.BlockSpec((RT, H), lambda i: (i, 0)),
        compiler_params=pltpu.CompilerParams(
            dimension_semantics=("parallel",),
            vmem_limit_bytes=VMEM_LIMIT),
    )(x2d, p["w_proj"], p["w_tg0"], p["b_tg0"], p["w_tg1"], p["b_tg1"])
    return out[:N]


# --------------------------------------------------------------------------
# Kernel 2: fused bidirectional LSTM layer.
#   * per-chunk input projection (bf16 MXU) is computed inside the kernel, so
#     the gate pre-activations never touch HBM;
#   * fwd+bwd recurrence shares ONE block-diagonal (2H, 8H) matmul per step
#     on the fused state [h_f | h_b];
#   * the backward direction is fed through a reversed-chunk BlockSpec
#     index_map, so no HBM reversals/transposes are needed.
# Gate order matches PyTorch: i, f, g, o.
# --------------------------------------------------------------------------
def _bilstm_kernel(xf_ref, xb_ref, wihf_ref, wihb_ref, b_ref, whh_ref,
                   of_ref, ob_ref, h_scr, c_scr, *, ch, hidden):
    H = hidden

    @pl.when(pl.program_id(0) == 0)
    def _():
        h_scr[...] = jnp.zeros_like(h_scr)
        c_scr[...] = jnp.zeros_like(c_scr)

    B = of_ref.shape[0]
    D = xf_ref.shape[-1]
    b_all = b_ref[...]                                           # (1, 8H)

    # Hoisted chunk input projections (bf16 operands, f32 accumulation).
    gf = (jnp.dot(xf_ref[...].reshape(B * ch, D).astype(jnp.bfloat16),
                  wihf_ref[...], preferred_element_type=jnp.float32)
          + b_all[:, :4 * H]).reshape(B, ch, 4 * H)
    gb = (jnp.dot(xb_ref[...].reshape(B * ch, D).astype(jnp.bfloat16),
                  wihb_ref[...], preferred_element_type=jnp.float32)
          + b_all[:, 4 * H:]).reshape(B, ch, 4 * H)

    whh = whh_ref[...]                                           # (2H, 8H)
    h2 = h_scr[...]                                              # (B, 2H)
    c2 = c_scr[...]                                              # (B, 2H)

    def cell(gates, c_prev):
        i = jax.nn.sigmoid(gates[:, 0:H])
        f = jax.nn.sigmoid(gates[:, H:2 * H])
        g = jnp.tanh(gates[:, 2 * H:3 * H])
        o = jax.nn.sigmoid(gates[:, 3 * H:4 * H])
        c_new = f * c_prev + i * g
        return o * jnp.tanh(c_new), c_new

    # statically unrolled chunk: fwd walks t = 0..ch-1, bwd walks ch-1..0
    for t in range(ch):
        rec = jnp.dot(h2, whh, preferred_element_type=jnp.float32)  # (B, 8H)
        hf, cf = cell(gf[:, t, :] + rec[:, :4 * H], c2[:, :H])
        hb, cb = cell(gb[:, ch - 1 - t, :] + rec[:, 4 * H:], c2[:, H:])
        of_ref[:, t, :] = hf
        ob_ref[:, ch - 1 - t, :] = hb
        h2 = jnp.concatenate([hf, hb], axis=-1)
        c2 = jnp.concatenate([cf, cb], axis=-1)

    h_scr[...] = h2
    c_scr[...] = c2


def _pick_chunk(T):
    """Chunk length (multiple of 8). Time axis is zero-padded if needed."""
    for c in (32, 16, 8):
        if T % c == 0:
            return c
    return 16 if T > 16 else 8


def bilstm_layer(x, lp):
    """Bidirectional LSTM layer: (B, T, D) -> (B, T, 2H)."""
    B, T, D = x.shape
    H4 = lp["w_ih_f"].shape[1]
    H = H4 // 4

    ch = _pick_chunk(T)
    Tp = _round_up(T, ch)
    n_pad = Tp - T
    if n_pad:
        # pad at the END for the forward stream and at the FRONT for the
        # backward stream so both directions see exactly the real tokens
        # before any padding (full-length semantics preserved).
        x_f = jnp.pad(x, ((0, 0), (0, n_pad), (0, 0)))
        x_b = jnp.pad(x, ((0, 0), (n_pad, 0), (0, 0)))
    else:
        x_f = x
        x_b = x
    nc = Tp // ch
    const = lambda c: (0, 0)

    kernel = functools.partial(_bilstm_kernel, ch=ch, hidden=H)
    out_f, out_b = pl.pallas_call(
        kernel,
        out_shape=(jax.ShapeDtypeStruct((B, Tp, H), jnp.float32),
                   jax.ShapeDtypeStruct((B, Tp, H), jnp.float32)),
        grid=(nc,),
        in_specs=[
            pl.BlockSpec((B, ch, D), lambda c: (0, c, 0)),
            pl.BlockSpec((B, ch, D), lambda c: (0, nc - 1 - c, 0)),
            pl.BlockSpec((D, H4), const),
            pl.BlockSpec((D, H4), const),
            pl.BlockSpec((1, 2 * H4), const),
            pl.BlockSpec((2 * H, 2 * H4), const),
        ],
        out_specs=(pl.BlockSpec((B, ch, H), lambda c: (0, c, 0)),
                   pl.BlockSpec((B, ch, H), lambda c: (0, nc - 1 - c, 0))),
        scratch_shapes=[pltpu.VMEM((B, 2 * H), jnp.float32),
                        pltpu.VMEM((B, 2 * H), jnp.float32)],
        compiler_params=pltpu.CompilerParams(
            dimension_semantics=("arbitrary",),
            vmem_limit_bytes=VMEM_LIMIT),
    )(x_f, x_b, lp["w_ih_f"], lp["w_ih_b"], lp["b"], lp["whh"])

    out_f = out_f[:, :T, :]
    if n_pad:
        out_b = out_b[:, n_pad:, :]
    # TODO(synk): pack_padded_sequence semantics (per-sequence lengths) for the
    # backward direction are not reproduced; the demo uses full-length sequences.
    return jnp.concatenate([out_f, out_b], axis=-1)


def bilstm_stack(x, layers_p):
    for lp in layers_p:
        x = bilstm_layer(x, lp)
    return x


# --------------------------------------------------------------------------
# Kernel 3: BiDAF attention — tiled over batch ("parallel").
#   * no ones-matmul (q-side similarity term is a lane reduce),
#   * p1 @ (p2^T @ c) reassociation avoids the (Lc, Lc) intermediate,
#   * bf16 MXU operands / f32 accumulation,
#   * one lane-dense full-width output store,
#   * attention bias scalar lives in SMEM.
# --------------------------------------------------------------------------
def _attn_kernel(c_ref, q_ref, cmask_ref, qmask_ref,
                 cw_ref, qw_ref, cqw_ref, bias_ref, out_ref):
    c = c_ref[...]                                      # (1, Lc, D)
    q = q_ref[...]                                      # (1, Lq, D)
    cmask = cmask_ref[...]                              # (1, Lc, 1)
    qmask = qmask_ref[...]                              # (1, 1, Lq)
    D = c.shape[-1]
    cw = cw_ref[...].reshape(1, 1, D)
    qw = qw_ref[...].reshape(1, 1, D)
    cqw = cqw_ref[...].reshape(1, 1, D)
    bias = bias_ref[0, 0]                               # scalar from SMEM

    # similarity  s[l,m] = c.cw + q.qw + (c*cqw).q + bias
    s0 = jnp.sum(c * cw, axis=-1, keepdims=True)        # (1, Lc, 1)
    s1 = jnp.sum(q * qw, axis=-1)[:, None, :]           # (1, 1, Lq) lane reduce
    s = jnp.einsum('bld,bmd->blm',
                   (c * cqw).astype(jnp.bfloat16), q.astype(jnp.bfloat16),
                   preferred_element_type=jnp.float32)
    s = s + s0 + s1 + bias                               # (1, Lc, Lq)

    # masked softmax over the question dim (last axis)
    sq = jnp.where(qmask > 0, s, NEG_INF)
    sq = sq - jnp.max(sq, axis=-1, keepdims=True)
    eq = jnp.exp(sq)
    p1 = eq * pl.reciprocal(jnp.sum(eq, axis=-1, keepdims=True), approx=True)

    # masked softmax over the context dim (axis=1)
    sc = jnp.where(cmask > 0, s, NEG_INF)
    sc = sc - jnp.max(sc, axis=1, keepdims=True)
    ec = jnp.exp(sc)
    p2 = ec * pl.reciprocal(jnp.sum(ec, axis=1, keepdims=True), approx=True)

    a = jnp.einsum('blm,bmd->bld', p1.astype(jnp.bfloat16),
                   q.astype(jnp.bfloat16),
                   preferred_element_type=jnp.float32)   # (1, Lc, D)
    # reassociated: r = p2^T @ c  (1, Lq, D), then b = p1 @ r  (1, Lc, D)
    r = jnp.einsum('bkm,bkd->bmd', p2.astype(jnp.bfloat16),
                   c.astype(jnp.bfloat16),
                   preferred_element_type=jnp.float32)
    bb = jnp.einsum('blm,bmd->bld', p1.astype(jnp.bfloat16),
                    r.astype(jnp.bfloat16),
                    preferred_element_type=jnp.float32)

    # single lane-dense full-width store
    out_ref[...] = jnp.concatenate([c, a, c * a, c * bb], axis=-1)


def bidaf_attention(c, q, c_mask, q_mask, p):
    B, Lc, D2 = c.shape
    Lq = q.shape[1]
    cm = c_mask[:, :, None]                              # (B, Lc, 1)
    qm = q_mask[:, None, :]                              # (B, 1, Lq)
    const2 = lambda b: (0, 0)
    return pl.pallas_call(
        _attn_kernel,
        out_shape=jax.ShapeDtypeStruct((B, Lc, 4 * D2), jnp.float32),
        grid=(B,),
        in_specs=[
            pl.BlockSpec((1, Lc, D2), lambda b: (b, 0, 0)),
            pl.BlockSpec((1, Lq, D2), lambda b: (b, 0, 0)),
            pl.BlockSpec((1, Lc, 1), lambda b: (b, 0, 0)),
            pl.BlockSpec((1, 1, Lq), lambda b: (b, 0, 0)),
            pl.BlockSpec((1, D2), const2),
            pl.BlockSpec((1, D2), const2),
            pl.BlockSpec((1, D2), const2),
            pl.BlockSpec(memory_space=pltpu.MemorySpace.SMEM),
        ],
        out_specs=pl.BlockSpec((1, Lc, 4 * D2), lambda b: (b, 0, 0)),
        compiler_params=pltpu.CompilerParams(
            dimension_semantics=("parallel",),
            vmem_limit_bytes=VMEM_LIMIT),
    )(c, q, cm, qm, p["c_w"], p["q_w"], p["cq_w"], p["bias"])


# --------------------------------------------------------------------------
# Kernel 4: BiDAF output — one fused (12H, 2) logit matmul with Lc on the
# lane axis; masked log-softmax is a lane reduce; output laid out (B, 2, Lc).
# --------------------------------------------------------------------------
def _out_kernel(att_ref, mod_ref, mod2_ref, mask_ref, w_ref, b_ref, o_ref):
    x = jnp.concatenate([att_ref[0], mod_ref[0], mod2_ref[0]],
                        axis=-1)                         # (Lc, 12H)
    # (2, Lc): contract w's dim 0 with x's dim 1 -> Lc lands on the lane axis
    lgT = jax.lax.dot_general(
        w_ref[...].astype(jnp.bfloat16), x.astype(jnp.bfloat16),
        dimension_numbers=(((0,), (1,)), ((), ())),
        preferred_element_type=jnp.float32)
    lgT = lgT + b_ref[...]                               # b is (2, 1)

    mask = mask_ref[0]                                   # (1, Lc)
    ml = jnp.where(mask > 0, lgT, NEG_INF)
    ml = ml - jnp.max(ml, axis=-1, keepdims=True)
    o_ref[0] = ml - jnp.log(jnp.sum(jnp.exp(ml), axis=-1, keepdims=True))


def bidaf_output(att, mod, mod2, c_mask, p):
    B, Lc, D8 = att.shape
    D2 = mod.shape[2]
    DW = D8 + 2 * D2
    cm = c_mask[:, None, :]                              # (B, 1, Lc)
    const2 = lambda b: (0, 0)
    out = pl.pallas_call(
        _out_kernel,
        out_shape=jax.ShapeDtypeStruct((B, 2, Lc), jnp.float32),
        grid=(B,),
        in_specs=[
            pl.BlockSpec((1, Lc, D8), lambda b: (b, 0, 0)),
            pl.BlockSpec((1, Lc, D2), lambda b: (b, 0, 0)),
            pl.BlockSpec((1, Lc, D2), lambda b: (b, 0, 0)),
            pl.BlockSpec((1, 1, Lc), lambda b: (b, 0, 0)),
            pl.BlockSpec((DW, 2), const2),
            pl.BlockSpec((2, 1), const2),
        ],
        out_specs=pl.BlockSpec((1, 2, Lc), lambda b: (b, 0, 0)),
        compiler_params=pltpu.CompilerParams(
            dimension_semantics=("parallel",),
            vmem_limit_bytes=VMEM_LIMIT),
    )(att, mod, mod2, cm, p["w"], p["b"])
    return out[:, 0, :], out[:, 1, :]


# --------------------------------------------------------------------------
# Full forward pass
# --------------------------------------------------------------------------
def bidaf_forward(params, cw_idxs, qw_idxs):
    B, Lc = cw_idxs.shape
    Lq = qw_idxs.shape[1]
    c_mask = (cw_idxs != 0).astype(jnp.float32)                  # (B, Lc)
    q_mask = (qw_idxs != 0).astype(jnp.float32)                  # (B, Lq)

    # embedding lookup (gather) stays in JAX; c/q streams share one launch
    idxs = jnp.concatenate([cw_idxs.reshape(-1), qw_idxs.reshape(-1)], axis=0)
    emb_raw = params["word_vectors"][idxs]                       # (B*(Lc+Lq), E)
    hwy = emb_proj_highway(emb_raw, params["emb"])               # (N, H)
    H = hwy.shape[-1]
    c_emb = hwy[:B * Lc].reshape(B, Lc, H)
    q_emb = hwy[B * Lc:].reshape(B, Lq, H)

    c_enc = bilstm_stack(c_emb, params["enc"])                   # (B, Lc, 2H)
    q_enc = bilstm_stack(q_emb, params["enc"])                   # (B, Lq, 2H)

    att = bidaf_attention(c_enc, q_enc, c_mask, q_mask, params["att"])  # 8H
    mod = bilstm_stack(att, params["mod"])                       # (B, Lc, 2H)
    mod2 = bilstm_stack(mod, params["out_rnn"])                  # (B, Lc, 2H)

    return bidaf_output(att, mod, mod2, c_mask, params["out"])


# --------------------------------------------------------------------------
# Deterministic parameter construction
# --------------------------------------------------------------------------
def _rand(key, shape, scale=0.1):
    return scale * jax.random.normal(key, shape, dtype=jnp.float32)


def _bilstm_params(key, in_sizes, H):
    layers = []
    for D in in_sizes:
        key, kf, kb = jax.random.split(key, 3)
        kf1, kf2, kf3 = jax.random.split(kf, 3)
        kb1, kb2, kb3 = jax.random.split(kb, 3)
        w_ih_f, whh_f, b_f = (_rand(kf1, (D, 4 * H)), _rand(kf2, (H, 4 * H)),
                              _rand(kf3, (1, 4 * H)))
        w_ih_b, whh_b, b_b = (_rand(kb1, (D, 4 * H)), _rand(kb2, (H, 4 * H)),
                              _rand(kb3, (1, 4 * H)))
        # block-diagonal recurrent weight: [h_f | h_b] -> [gates_f | gates_b]
        whh = jnp.zeros((2 * H, 8 * H), jnp.float32)
        whh = whh.at[:H, :4 * H].set(whh_f)
        whh = whh.at[H:, 4 * H:].set(whh_b)
        layers.append({
            "w_ih_f": w_ih_f.astype(jnp.bfloat16),   # MXU operands stored bf16
            "w_ih_b": w_ih_b.astype(jnp.bfloat16),
            "b": jnp.concatenate([b_f, b_b], axis=1),             # (1, 8H)
            "whh": whh,                                           # (2H, 8H) f32
        })
    return layers


def init_params(key, V, E, H):
    ks = jax.random.split(key, 16)
    emb = {
        "w_proj": _rand(ks[1], (E, H)),
        # transform|gate fused: (H, 2H), bias (1, 2H)
        "w_tg0": jnp.concatenate([_rand(ks[2], (H, H)), _rand(ks[4], (H, H))],
                                 axis=1),
        "b_tg0": jnp.concatenate([_rand(ks[3], (1, H)), _rand(ks[5], (1, H))],
                                 axis=1),
        "w_tg1": jnp.concatenate([_rand(ks[6], (H, H)), _rand(ks[8], (H, H))],
                                 axis=1),
        "b_tg1": jnp.concatenate([_rand(ks[7], (1, H)), _rand(ks[9], (1, H))],
                                 axis=1),
    }
    att = {
        "c_w": _rand(ks[10], (1, 2 * H)),
        "q_w": _rand(ks[11], (1, 2 * H)),
        "cq_w": _rand(ks[12], (1, 2 * H)),
        "bias": jnp.zeros((1, 1), jnp.float32),
    }
    ko = jax.random.split(ks[13], 6)
    wa1, wa2 = _rand(ko[0], (8 * H, 1)), _rand(ko[3], (8 * H, 1))
    wm1, wm2 = _rand(ko[1], (2 * H, 1)), _rand(ko[4], (2 * H, 1))
    b1, b2 = _rand(ko[2], (1, 1)), _rand(ko[5], (1, 1))
    z = jnp.zeros((2 * H, 1), jnp.float32)
    out = {
        # fused (12H, 2) logit weight: col 0 = start (att, mod), col 1 = end (att, mod2)
        "w": jnp.concatenate([
            jnp.concatenate([wa1, wa2], axis=1),                  # (8H, 2)
            jnp.concatenate([wm1, z], axis=1),                    # (2H, 2)
            jnp.concatenate([z, wm2], axis=1),                    # (2H, 2)
        ], axis=0),                                               # (12H, 2)
        "b": jnp.concatenate([b1, b2], axis=0),                   # (2, 1)
    }
    return {
        "word_vectors": _rand(ks[0], (V, E), scale=1.0),
        "emb": emb,
        "enc": _bilstm_params(ks[14], [H], H),                    # 1 layer
        "att": att,
        "mod": _bilstm_params(ks[15], [8 * H, 2 * H], H),         # 2 layers
        "out_rnn": _bilstm_params(jax.random.fold_in(key, 99), [2 * H], H),
        "out": out,
    }


# --------------------------------------------------------------------------
if __name__ == "__main__":
    V, E, H = 50, 64, 32       # vocab, word-vector dim, hidden_size
    B, Lc, Lq = 2, 16, 8       # batch, context len, question len

    key = jax.random.PRNGKey(0)
    kp, kc, kq = jax.random.split(key, 3)
    params = init_params(kp, V, E, H)

    # indices >= 1 so masks are all True (full-length sequences, no padding)
    cw_idxs = jax.random.randint(kc, (B, Lc), 1, V, dtype=jnp.int32)
    qw_idxs = jax.random.randint(kq, (B, Lq), 1, V, dtype=jnp.int32)

    log_p1, log_p2 = bidaf_forward(params, cw_idxs, qw_idxs)
    jax.block_until_ready((log_p1, log_p2))

    assert log_p1.shape == (B, Lc) and log_p2.shape == (B, Lc)
    assert bool(jnp.all(jnp.isfinite(log_p1))) and bool(jnp.all(jnp.isfinite(log_p2)))
    # log-softmax rows should sum (in prob space) to ~1
    assert bool(jnp.allclose(jnp.exp(log_p1).sum(-1), 1.0, atol=1e-4))
    assert bool(jnp.allclose(jnp.exp(log_p2).sum(-1), 1.0, atol=1e-4))
    print("KERNEL_OK")
</pallas_src>

<mosaic_0001>
module attributes {stable_mosaic.version = 11 : i64} {
  func.func @_emb_hwy_kernel(%arg0: i32, %arg1: memref<48x64xf32, #tpu.memory_space<vmem>>, %arg2: memref<64x32xf32, #tpu.memory_space<vmem>>, %arg3: memref<32x64xf32, #tpu.memory_space<vmem>>, %arg4: memref<1x64xf32, #tpu.memory_space<vmem>>, %arg5: memref<32x64xf32, #tpu.memory_space<vmem>>, %arg6: memref<1x64xf32, #tpu.memory_space<vmem>>, %arg7: memref<48x32xf32, #tpu.memory_space<vmem>>) attributes {dimension_semantics = [#tpu.dimension_semantics<parallel>], iteration_bounds = array<i64: 1>, scalar_prefetch = 0 : i64, scratch_operands = 0 : i64, tpu.core_type = #tpu.core_type<tc>, window_params = [{transform_indices = @transform_0, window_bounds = array<i64: 48, 64>}, {pipeline_mode = #tpu.pipeline_mode<synchronous>, transform_indices = @transform_1, window_bounds = array<i64: 64, 32>}, {pipeline_mode = #tpu.pipeline_mode<synchronous>, transform_indices = @transform_2, window_bounds = array<i64: 32, 64>}, {pipeline_mode = #tpu.pipeline_mode<synchronous>, transform_indices = @transform_3, window_bounds = array<i64: 1, 64>}, {pipeline_mode = #tpu.pipeline_mode<synchronous>, transform_indices = @transform_4, window_bounds = array<i64: 32, 64>}, {pipeline_mode = #tpu.pipeline_mode<synchronous>, transform_indices = @transform_5, window_bounds = array<i64: 1, 64>}, {transform_indices = @transform_6, window_bounds = array<i64: 48, 32>}]} {
    %c0 = arith.constant 0 : index
    %c0_0 = arith.constant 0 : index
    %0 = vector.load %arg1[%c0, %c0_0] : memref<48x64xf32, #tpu.memory_space<vmem>>, vector<48x64xf32>
    %c0_1 = arith.constant 0 : index
    %c0_2 = arith.constant 0 : index
    %1 = vector.load %arg2[%c0_1, %c0_2] : memref<64x32xf32, #tpu.memory_space<vmem>>, vector<64x32xf32>
    %cst = arith.constant dense<0.000000e+00> : vector<48x32xf32>
    %2 = tpu.matmul %0, %1, %cst {dimension_numbers = #tpu.dot_dimension_numbers<[1], [0], [0], [1], [0, 0, 1, 1], [], []>} : vector<48x64xf32>, vector<64x32xf32>, vector<48x32xf32> -> vector<48x32xf32>
    %c0_3 = arith.constant 0 : index
    %c0_4 = arith.constant 0 : index
    %3 = vector.load %arg3[%c0_3, %c0_4] : memref<32x64xf32, #tpu.memory_space<vmem>>, vector<32x64xf32>
    %cst_5 = arith.constant dense<0.000000e+00> : vector<48x64xf32>
    %4 = tpu.matmul %2, %3, %cst_5 {dimension_numbers = #tpu.dot_dimension_numbers<[1], [0], [0], [1], [0, 0, 1, 1], [], []>} : vector<48x32xf32>, vector<32x64xf32>, vector<48x64xf32> -> vector<48x64xf32>
    %c0_6 = arith.constant 0 : index
    %c0_7 = arith.constant 0 : index
    %5 = vector.load %arg4[%c0_6, %c0_7] : memref<1x64xf32, #tpu.memory_space<vmem>>, vector<1x64xf32>
    %6 = vector.broadcast %5 : vector<1x64xf32> to vector<48x64xf32>
    %7 = arith.addf %4, %6 : vector<48x64xf32>
    %8 = vector.extract_strided_slice %7 {offsets = [0, 0], sizes = [48, 32], strides = [1, 1]} : vector<48x64xf32> to vector<48x32xf32>
    %cst_8 = arith.constant 0.000000e+00 : f32
    %9 = vector.broadcast %cst_8 : f32 to vector<48x32xf32>
    %10 = arith.maximumf %8, %9 : vector<48x32xf32>
    %11 = vector.extract_strided_slice %7 {offsets = [0, 32], sizes = [48, 32], strides = [1, 1]} : vector<48x64xf32> to vector<48x32xf32>
    %12 = arith.negf %11 : vector<48x32xf32>
    %13 = math.exp %12 : vector<48x32xf32>
    %cst_9 = arith.constant 1.000000e+00 : f32
    %14 = vector.broadcast %cst_9 : f32 to vector<48x32xf32>
    %15 = arith.addf %14, %13 : vector<48x32xf32>
    %16 = arith.divf %14, %15 : vector<48x32xf32>
    %17 = arith.mulf %16, %10 : vector<48x32xf32>
    %cst_10 = arith.constant 1.000000e+00 : f32
    %18 = vector.broadcast %cst_10 : f32 to vector<48x32xf32>
    %19 = arith.subf %18, %16 : vector<48x32xf32>
    %20 = arith.mulf %19, %2 : vector<48x32xf32>
    %21 = arith.addf %17, %20 : vector<48x32xf32>
    %c0_11 = arith.constant 0 : index
    %c0_12 = arith.constant 0 : index
    %22 = vector.load %arg5[%c0_11, %c0_12] : memref<32x64xf32, #tpu.memory_space<vmem>>, vector<32x64xf32>
    %cst_13 = arith.constant dense<0.000000e+00> : vector<48x64xf32>
    %23 = tpu.matmul %21, %22, %cst_13 {dimension_numbers = #tpu.dot_dimension_numbers<[1], [0], [0], [1], [0, 0, 1, 1], [], []>} : vector<48x32xf32>, vector<32x64xf32>, vector<48x64xf32> -> vector<48x64xf32>
    %c0_14 = arith.constant 0 : index
    %c0_15 = arith.constant 0 : index
    %24 = vector.load %arg6[%c0_14, %c0_15] : memref<1x64xf32, #tpu.memory_space<vmem>>, vector<1x64xf32>
    %25 = vector.broadcast %24 : vector<1x64xf32> to vector<48x64xf32>
    %26 = arith.addf %23, %25 : vector<48x64xf32>
    %27 = vector.extract_strided_slice %26 {offsets = [0, 0], sizes = [48, 32], strides = [1, 1]} : vector<48x64xf32> to vector<48x32xf32>
    %cst_16 = arith.constant 0.000000e+00 : f32
    %28 = vector.broadcast %cst_16 : f32 to vector<48x32xf32>
    %29 = arith.maximumf %27, %28 : vector<48x32xf32>
    %30 = vector.extract_strided_slice %26 {offsets = [0, 32], sizes = [48, 32], strides = [1, 1]} : vector<48x64xf32> to vector<48x32xf32>
    %31 = arith.negf %30 : vector<48x32xf32>
    %32 = math.exp %31 : vector<48x32xf32>
    %cst_17 = arith.constant 1.000000e+00 : f32
    %33 = vector.broadcast %cst_17 : f32 to vector<48x32xf32>
    %34 = arith.addf %33, %32 : vector<48x32xf32>
    %35 = arith.divf %33, %34 : vector<48x32xf32>
    %36 = arith.mulf %35, %29 : vector<48x32xf32>
    %cst_18 = arith.constant 1.000000e+00 : f32
    %37 = vector.broadcast %cst_18 : f32 to vector<48x32xf32>
    %38 = arith.subf %37, %35 : vector<48x32xf32>
    %39 = arith.mulf %38, %21 : vector<48x32xf32>
    %40 = arith.addf %36, %39 : vector<48x32xf32>
    %c0_19 = arith.constant 0 : index
    %c0_20 = arith.constant 0 : index
    %41 = vector.load %arg7[%c0_19, %c0_20] : memref<48x32xf32, #tpu.memory_space<vmem>>, vector<48x32xf32>
    tpu.vector_store %arg7[%c0_19, %c0_20], %40 {strides = array<i32>} : memref<48x32xf32, #tpu.memory_space<vmem>>, vector<48x32xf32>,
    return
  }
  func.func @transform_0(%arg0: i32) -> (i32, i32) {
    %c0_i32 = arith.constant 0 : i32
    %c0_i32_0 = arith.constant 0 : i32
    return %arg0, %c0_i32 : i32, i32
  }
  func.func @transform_1(%arg0: i32) -> (i32, i32) {
    %c0_i32 = arith.constant 0 : i32
    %c0_i32_0 = arith.constant 0 : i32
    %c0_i32_1 = arith.constant 0 : i32
    return %c0_i32, %c0_i32_0 : i32, i32
  }
  func.func @transform_2(%arg0: i32) -> (i32, i32) {
    %c0_i32 = arith.constant 0 : i32
    %c0_i32_0 = arith.constant 0 : i32
    %c0_i32_1 = arith.constant 0 : i32
    return %c0_i32, %c0_i32_0 : i32, i32
  }
  func.func @transform_3(%arg0: i32) -> (i32, i32) {
    %c0_i32 = arith.constant 0 : i32
    %c0_i32_0 = arith.constant 0 : i32
    %c0_i32_1 = arith.constant 0 : i32
    return %c0_i32, %c0_i32_0 : i32, i32
  }
  func.func @transform_4(%arg0: i32) -> (i32, i32) {
    %c0_i32 = arith.constant 0 : i32
    %c0_i32_0 = arith.constant 0 : i32
    %c0_i32_1 = arith.constant 0 : i32
    return %c0_i32, %c0_i32_0 : i32, i32
  }
  func.func @transform_5(%arg0: i32) -> (i32, i32) {
    %c0_i32 = arith.constant 0 : i32
    %c0_i32_0 = arith.constant 0 : i32
    %c0_i32_1 = arith.constant 0 : i32
    return %c0_i32, %c0_i32_0 : i32, i32
  }
  func.func @transform_6(%arg0: i32) -> (i32, i32) {
    %c0_i32 = arith.constant 0 : i32
    %c0_i32_0 = arith.constant 0 : i32
    return %arg0, %c0_i32 : i32, i32
  }
}

</mosaic_0001>

<llo_original>
// kernel: tpu_custom_call.1
$region0: #{tpu_custom_call.1}
  #allocation0 [shape = 'u32[]', space=smem, size = 0x4, offset = 0x4, fixed_abs, tag = 'smem constant byte address 0x4 - core index']
  #allocation1 [shape = 'u32[72,128]{1,0:T(1,128)}', space=vmem, size = 0x9000, scoped, tag = 'internal scratch']
  %s0 = inlined_call_operand.vmem [shape: f32[48,64], index: 0, kind: input, shape index: {}]
  %s1 = inlined_call_operand.vmem [shape: f32[64,32], index: 1, kind: input, shape index: {}]
  %s2 = inlined_call_operand.vmem [shape: f32[32,64], index: 2, kind: input, shape index: {}]
  %s3 = inlined_call_operand.vmem [shape: f32[1,64], index: 3, kind: input, shape index: {}]
  %s4 = inlined_call_operand.hbm [shape: f32[32,64], index: 4, kind: input, shape index: {}]
  %s5 = inlined_call_operand.vmem [shape: f32[1,64], index: 5, kind: input, shape index: {}]
  %s6 = inlined_call_operand.vmem [shape: f32[48,32], index: 6, kind: output, shape index: {}]
  %s7 = sld [smem:[#allocation0]]
  $region38: #{tpu_custom_call.1} parent=0
    _
  %s9 = ssub.s32 1, %s7
  %s10 = scalar_select 0, %s9, %s7
  $region1: #{tpu_custom_call.1} parent=0
    #allocation2 [shape = 'u8[16384]{0}', space=vmem, size = 0x4000, scoped, tag = 'input window, operand 4, single buffered']
    #allocation3 [shape = 's32[1]{0}', space=sflag, size = 0x4, scoped, tag = 'scoped memory for tpu_custom_call.1']
    %11 = vsyncpa [#allocation3], 0
    // Predicated region
    $region2: #{tpu_custom_call.1} parent=1 // pred_check
      _
    $region3: #{tpu_custom_call.1} parent=1 // pred_check_branch
      %13 = sbr.rel (0) target = $region5
    $region4: #{tpu_custom_call.1} parent=1 // pred_region
      _
    $region5: #{tpu_custom_call.1} parent=1 // pred_fallthru
      _
    // Predicated region
    $region6: #{tpu_custom_call.1} parent=1 // pred_check
      _
    $region7: #{tpu_custom_call.1} parent=1 // pred_check_branch
      %15 = sbr.rel (0) target = $region9
    $region8: #{tpu_custom_call.1} parent=1 // pred_region
      _
    $region9: #{tpu_custom_call.1} parent=1 // pred_fallthru
      _
    // Predicated region
    $region10: #{tpu_custom_call.1} parent=1 // pred_check
      _
    $region11: #{tpu_custom_call.1} parent=1 // pred_check_branch
      %17 = sbr.rel (0) target = $region13
    $region12: #{tpu_custom_call.1} parent=1 // pred_region
      _
    $region13: #{tpu_custom_call.1} parent=1 // pred_fallthru
      _
    // Predicated region
    $region14: #{tpu_custom_call.1} parent=1 // pred_check
      _
    $region15: #{tpu_custom_call.1} parent=1 // pred_check_branch
      %19 = sbr.rel (0) target = $region17
    $region16: #{tpu_custom_call.1} parent=1 // pred_region
      _
    $region17: #{tpu_custom_call.1} parent=1 // pred_fallthru
      _
    // Predicated region
    $region18: #{tpu_custom_call.1} parent=1 // pred_check
      _
    $region19: #{tpu_custom_call.1} parent=1 // pred_check_branch
      %21 = sbr.rel (0) target = $region21
    $region20: #{tpu_custom_call.1} parent=1 // pred_region
      %23 = vsyncadd [#allocation3], 0
      %s24 = sshll.u32 %s4, 4
      %s25 = int_to_ptr.hbm [resolvable:$true] %s24
      %s26 = sshll.u32 [#allocation2], 4
      %s27 = int_to_ptr.vmem [resolvable:$true] %s26
      %32 = dma.hbm_to_vmem [thread:$0]  %s25, 512, %s27, [#allocation3], 128, 128, 8
    $region21: #{tpu_custom_call.1} parent=1 // pred_fallthru
      _
    // Predicated region
    $region22: #{tpu_custom_call.1} parent=1 // pred_check
      _
    $region23: #{tpu_custom_call.1} parent=1 // pred_check_branch
      %34 = sbr.rel (0) target = $region25
    $region24: #{tpu_custom_call.1} parent=1 // pred_region
      _
    $region25: #{tpu_custom_call.1} parent=1 // pred_fallthru
      _
    // Predicated region
    $region26: #{tpu_custom_call.1} parent=1 // pred_check
      _
    $region27: #{tpu_custom_call.1} parent=1 // pred_check_branch
      %36 = sbr.rel (0) target = $region29
    $region28: #{tpu_custom_call.1} parent=1 // pred_region
      %38 = dma.done [#allocation3], 512
    $region29: #{tpu_custom_call.1} parent=1 // pred_fallthru
      _
    %v39 = vld [vmem:[%s0] sm:$0xff]
    %v40 = vld [vmem:[%s0 + $0x8] sm:$0xff]
    %v41 = vld [vmem:[%s0 + $0x10] sm:$0xff]
    %v42 = vld [vmem:[%s0 + $0x18] sm:$0xff]
    %v43 = vld [vmem:[%s0 + $0x20] sm:$0xff]
    %v44 = vld [vmem:[%s0 + $0x28] sm:$0xff]
    %v45 = vld [vmem:[%s1] sm:$0xff]
    %v46 = vld [vmem:[%s1 + $0x8] sm:$0xff]
    %v47 = vld [vmem:[%s1 + $0x10] sm:$0xff]
    %v48 = vld [vmem:[%s1 + $0x18] sm:$0xff]
    %v49 = vld [vmem:[%s1 + $0x20] sm:$0xff]
    %v50 = vld [vmem:[%s1 + $0x28] sm:$0xff]
    %v51 = vld [vmem:[%s1 + $0x30] sm:$0xff]
    %v52 = vld [vmem:[%s1 + $0x38] sm:$0xff]
    %vm53 = vcmask 523264
    %v55 = vsel %vm53, %v39, 0
    %v58 = vsel %vm53, %v40, 0
    %v61 = vsel %vm53, %v41, 0
    %v64 = vsel %vm53, %v42, 0
    %v67 = vsel %vm53, %v43, 0
    %v70 = vsel %vm53, %v44, 0
    %72 = vmatpush.msra.mxu0 0.0
    %73 = vmatpush.msra.mxu0 0.0
    %74 = vmatpush.msra.mxu0 0.0
    %75 = vmatpush.msra.mxu0 0.0
    %76 = vmatpush.msra.mxu0 0.0
    %77 = vmatpush.msra.mxu0 0.0
    %78 = vmatpush.msra.mxu0 0.0
    %79 = vmatpush.msra.mxu0 0.0
    %80 = vmatpush.msra.mxu0 %v52
    %81 = vmatpush.msra.mxu0 %v51
    %82 = vmatpush.msra.mxu0 %v50
    %83 = vmatpush.msra.mxu0 %v49
    %84 = vmatpush.msra.mxu0 %v48
    %85 = vmatpush.msra.mxu0 %v47
    %86 = vmatpush.msra.mxu0 %v46
    %87 = vmatpush.msra.mxu0 %v45
    %88 = vmatmul.f32.gmra.mxu0 %v55
    %v89 = vpop.f32.mrf.mxu0
    %v90 = vadd.f32 0.0, %v89
    %91 = vmatmul.f32.gmra.mxu0 %v58
    %v92 = vpop.f32.mrf.mxu0
    %v93 = vadd.f32 0.0, %v92
    %94 = vmatmul.f32.gmra.mxu0 %v61
    %v95 = vpop.f32.mrf.mxu0
    %v96 = vadd.f32 0.0, %v95
    %97 = vmatmul.f32.gmra.mxu0 %v64
    %v98 = vpop.f32.mrf.mxu0
    %v99 = vadd.f32 0.0, %v98
    %100 = vmatmul.f32.gmra.mxu0 %v67
    %v101 = vpop.f32.mrf.mxu0
    %v102 = vadd.f32 0.0, %v101
    %103 = vmatmul.f32.gmra.mxu0 %v70
    %v104 = vpop.f32.mrf.mxu0
    %v105 = vadd.f32 0.0, %v104
    %106 = vdwg.mxu0
    %v107 = vld [vmem:[%s2] sm:$0xff]
    %v108 = vld [vmem:[%s2 + $0x8] sm:$0xff]
    %v109 = vld [vmem:[%s2 + $0x10] sm:$0xff]
    %v110 = vld [vmem:[%s2 + $0x18] sm:$0xff]
    %v111 = vld [vmem:[%s3] sm:$0x1]
    %v113 = vperm.slane %v111, 0
    %vm115 = vcmask 261120
    %v117 = vsel %vm115, %v90, 0
    %v120 = vsel %vm115, %v93, 0
    %v123 = vsel %vm115, %v96, 0
    %v126 = vsel %vm115, %v99, 0
    %v129 = vsel %vm115, %v102, 0
    %v132 = vsel %vm115, %v105, 0
    %134 = vmatpush.msra.mxu0 0.0
    %135 = vmatpush.msra.mxu0 0.0
    %136 = vmatpush.msra.mxu0 0.0
    %137 = vmatpush.msra.mxu0 0.0
    %138 = vmatpush.msra.mxu0 0.0
    %139 = vmatpush.msra.mxu0 0.0
    %140 = vmatpush.msra.mxu0 0.0
    %141 = vmatpush.msra.mxu0 0.0
    %142 = vmatpush.msra.mxu0 0.0
    %143 = vmatpush.msra.mxu0 0.0
    %144 = vmatpush.msra.mxu0 0.0
    %145 = vmatpush.msra.mxu0 0.0
    %146 = vmatpush.msra.mxu0 %v110
    %147 = vmatpush.msra.mxu0 %v109
    %148 = vmatpush.msra.mxu0 %v108
    %149 = vmatpush.msra.mxu0 %v107
    %150 = vmatmul.f32.gmra.mxu0 %v117
    %v151 = vpop.f32.mrf.mxu0
    %v152 = vadd.f32 %v113, %v151
    %153 = vmatmul.f32.gmra.mxu0 %v120
    %v154 = vpop.f32.mrf.mxu0
    %v155 = vadd.f32 %v113, %v154
    %156 = vmatmul.f32.gmra.mxu0 %v123
    %v157 = vpop.f32.mrf.mxu0
    %v158 = vadd.f32 %v113, %v157
    %159 = vmatmul.f32.gmra.mxu0 %v126
    %v160 = vpop.f32.mrf.mxu0
    %v161 = vadd.f32 %v113, %v160
    %162 = vmatmul.f32.gmra.mxu0 %v129
    %v163 = vpop.f32.mrf.mxu0
    %v164 = vadd.f32 %v113, %v163
    %165 = vmatmul.f32.gmra.mxu0 %v132
    %v166 = vpop.f32.mrf.mxu0
    %v167 = vadd.f32 %v113, %v166
    %168 = vdwg.mxu0
    %v169 = vmax.f32 %v152, 0.0
    %v170 = vmax.f32 %v155, 0.0
    %v171 = vmax.f32 %v158, 0.0
    %v172 = vmax.f32 %v161, 0.0
    %v173 = vmax.f32 %v164, 0.0
    %v174 = vmax.f32 %v167, 0.0
    %v175 = vxor.u32 %v152, 2147483648
    %v176 = vxor.u32 %v155, 2147483648
    %v177 = vxor.u32 %v158, 2147483648
    %v178 = vxor.u32 %v161, 2147483648
    %v179 = vxor.u32 %v164, 2147483648
    %v180 = vxor.u32 %v167, 2147483648
    %v181 = vmul.f32 %v175, 1.442695
    %v182 = vpow.pop %v181
    %v183 = vmul.f32 %v176, 1.442695
    %v184 = vpow.pop %v183
    %v185 = vmul.f32 %v177, 1.442695
    %v186 = vpow.pop %v185
    %v187 = vmul.f32 %v178, 1.442695
    %v188 = vpow.pop %v187
    %v189 = vmul.f32 %v179, 1.442695
    %v190 = vpow.pop %v189
    %v191 = vmul.f32 %v180, 1.442695
    %v192 = vpow.pop %v191
    %v193 = vadd.f32 %v182, 1.0
    %v194 = vadd.f32 %v184, 1.0
    %v195 = vadd.f32 %v186, 1.0
    %v196 = vadd.f32 %v188, 1.0
    %v197 = vadd.f32 %v190, 1.0
    %v198 = vadd.f32 %v192, 1.0
    %v199 = vrcp.pop %v193
    %v200 = vmul.f32 %v193, %v199
    %v201 = vsub.f32 1.0, %v200
    %v202 = vmul.f32 %v199, %v201
    %v203 = vadd.f32 %v199, %v202
    %vm204 = vweird.f32 %v193
    %vm205 = vweird.f32 %v199
    %vm206 = vmor %vm204, %vm205
    %v207 = vsel %vm206, %v199, %v203
    %v208 = vand.u32 2147483647, %v193
    %vm209 = vcmp.eq.f32.partialorder %v208, 8.507059e+37
    %v210 = vand.u32 %v193, 2147483648
    %v211 = vor.u32 1.1754944e-38, %v210
    %v212 = vsel %vm209, %v211, %v207
    %v213 = vmul.f32 1.0, %v212
    %v214 = vrcp.pop %v194
    %v215 = vmul.f32 %v194, %v214
    %v216 = vsub.f32 1.0, %v215
    %v217 = vmul.f32 %v214, %v216
    %v218 = vadd.f32 %v214, %v217
    %vm219 = vweird.f32 %v194
    %vm220 = vweird.f32 %v214
    %vm221 = vmor %vm219, %vm220
    %v222 = vsel %vm221, %v214, %v218
    %v223 = vand.u32 2147483647, %v194
    %vm224 = vcmp.eq.f32.partialorder %v223, 8.507059e+37
    %v225 = vand.u32 %v194, 2147483648
    %v226 = vor.u32 1.1754944e-38, %v225
    %v227 = vsel %vm224, %v226, %v222
    %v228 = vmul.f32 1.0, %v227
    %v229 = vrcp.pop %v195
    %v230 = vmul.f32 %v195, %v229
    %v231 = vsub.f32 1.0, %v230
    %v232 = vmul.f32 %v229, %v231
    %v233 = vadd.f32 %v229, %v232
    %vm234 = vweird.f32 %v195
    %vm235 = vweird.f32 %v229
    %vm236 = vmor %vm234, %vm235
    %v237 = vsel %vm236, %v229, %v233
    %v238 = vand.u32 2147483647, %v195
    %vm239 = vcmp.eq.f32.partialorder %v238, 8.507059e+37
    %v240 = vand.u32 %v195, 2147483648
    %v241 = vor.u32 1.1754944e-38, %v240
    %v242 = vsel %vm239, %v241, %v237
    %v243 = vmul.f32 1.0, %v242
    %v244 = vrcp.pop %v196
    %v245 = vmul.f32 %v196, %v244
    %v246 = vsub.f32 1.0, %v245
    %v247 = vmul.f32 %v244, %v246
    %v248 = vadd.f32 %v244, %v247
    %vm249 = vweird.f32 %v196
    %vm250 = vweird.f32 %v244
    %vm251 = vmor %vm249, %vm250
    %v252 = vsel %vm251, %v244, %v248
    %v253 = vand.u32 2147483647, %v196
    %vm254 = vcmp.eq.f32.partialorder %v253, 8.507059e+37
    %v255 = vand.u32 %v196, 2147483648
    %v256 = vor.u32 1.1754944e-38, %v255
    %v257 = vsel %vm254, %v256, %v252
    %v258 = vmul.f32 1.0, %v257
    %v259 = vrcp.pop %v197
    %v260 = vmul.f32 %v197, %v259
    %v261 = vsub.f32 1.0, %v260
    %v262 = vmul.f32 %v259, %v261
    %v263 = vadd.f32 %v259, %v262
    %vm264 = vweird.f32 %v197
    %vm265 = vweird.f32 %v259
    %vm266 = vmor %vm264, %vm265
    %v267 = vsel %vm266, %v259, %v263
    %v268 = vand.u32 2147483647, %v197
    %vm269 = vcmp.eq.f32.partialorder %v268, 8.507059e+37
    %v270 = vand.u32 %v197, 2147483648
    %v271 = vor.u32 1.1754944e-38, %v270
    %v272 = vsel %vm269, %v271, %v267
    %v273 = vmul.f32 1.0, %v272
    %v274 = vrcp.pop %v198
    %v275 = vmul.f32 %v198, %v274
    %v276 = vsub.f32 1.0, %v275
    %v277 = vmul.f32 %v274, %v276
    %v278 = vadd.f32 %v274, %v277
    %vm279 = vweird.f32 %v198
    %vm280 = vweird.f32 %v274
    %vm281 = vmor %vm279, %vm280
    %v282 = vsel %vm281, %v274, %v278
    %v283 = vand.u32 2147483647, %v198
    %vm284 = vcmp.eq.f32.partialorder %v283, 8.507059e+37
    %v285 = vand.u32 %v198, 2147483648
    %v286 = vor.u32 1.1754944e-38, %v285
    %v287 = vsel %vm284, %v286, %v282
    %v288 = vmul.f32 1.0, %v287
    %295 = vrot.lane.b32.xlu0 %v169, 32
    %v296 = vpop.permute.xlu0 %295
    %297 = vrot.lane.b32.xlu0 %v170, 32
    %v298 = vpop.permute.xlu0 %297
    %299 = vrot.lane.b32.xlu0 %v171, 32
    %v300 = vpop.permute.xlu0 %299
    %301 = vrot.lane.b32.xlu0 %v172, 32
    %v302 = vpop.permute.xlu0 %301
    %303 = vrot.lane.b32.xlu0 %v173, 32
    %v304 = vpop.permute.xlu0 %303
    %305 = vrot.lane.b32.xlu0 %v174, 32
    %v306 = vpop.permute.xlu0 %305
    %v313 = vmul.f32 %v213, %v296
    %v314 = vmul.f32 %v228, %v298
    %v315 = vmul.f32 %v243, %v300
    %v316 = vmul.f32 %v258, %v302
    %v317 = vmul.f32 %v273, %v304
    %v318 = vmul.f32 %v288, %v306
    %v319 = vsub.f32 1.0, %v213
    %v320 = vsub.f32 1.0, %v228
    %v321 = vsub.f32 1.0, %v243
    %v322 = vsub.f32 1.0, %v258
    %v323 = vsub.f32 1.0, %v273
    %v324 = vsub.f32 1.0, %v288
    %325 = vrot.lane.b32.xlu0 %v90, 32
    %v326 = vpop.permute.xlu0 %325
    %327 = vrot.lane.b32.xlu0 %v93, 32
    %v328 = vpop.permute.xlu0 %327
    %329 = vrot.lane.b32.xlu0 %v96, 32
    %v330 = vpop.permute.xlu0 %329
    %331 = vrot.lane.b32.xlu0 %v99, 32
    %v332 = vpop.permute.xlu0 %331
    %333 = vrot.lane.b32.xlu0 %v102, 32
    %v334 = vpop.permute.xlu0 %333
    %335 = vrot.lane.b32.xlu0 %v105, 32
    %v336 = vpop.permute.xlu0 %335
    %v343 = vmul.f32 %v319, %v326
    %v344 = vmul.f32 %v320, %v328
    %v345 = vmul.f32 %v321, %v330
    %v346 = vmul.f32 %v322, %v332
    %v347 = vmul.f32 %v323, %v334
    %v348 = vmul.f32 %v324, %v336
    %v349 = vadd.f32 %v313, %v343
    %v350 = vadd.f32 %v314, %v344
    %v351 = vadd.f32 %v315, %v345
    %v352 = vadd.f32 %v316, %v346
    %v353 = vadd.f32 %v317, %v347
    %v354 = vadd.f32 %v318, %v348
    %v355 = vld [vmem:[#allocation2] sm:$0xff]
    %v356 = vld [vmem:[#allocation2 + $0x8] sm:$0xff]
    %v357 = vld [vmem:[#allocation2 + $0x10] sm:$0xff]
    %v358 = vld [vmem:[#allocation2 + $0x18] sm:$0xff]
    %v359 = vld [vmem:[%s5] sm:$0x1]
    %v361 = vperm.slane %v359, 0
    %369 = vrot.lane.b32.xlu0 %v349, 96
    %v370 = vpop.permute.xlu0 %369
    %371 = vrot.lane.b32.xlu0 %v350, 96
    %v372 = vpop.permute.xlu0 %371
    %373 = vrot.lane.b32.xlu0 %v351, 96
    %v374 = vpop.permute.xlu0 %373
    %375 = vrot.lane.b32.xlu0 %v352, 96
    %v376 = vpop.permute.xlu0 %375
    %377 = vrot.lane.b32.xlu0 %v353, 96
    %v378 = vpop.permute.xlu0 %377
    %379 = vrot.lane.b32.xlu0 %v354, 96
    %v380 = vpop.permute.xlu0 %379
    %v381 = vsel %vm115, %v370, 0
    %v383 = vsel %vm115, %v372, 0
    %v385 = vsel %vm115, %v374, 0
    %v387 = vsel %vm115, %v376, 0
    %v389 = vsel %vm115, %v378, 0
    %v391 = vsel %vm115, %v380, 0
    %393 = vmatpush.msra.mxu0 0.0
    %394 = vmatpush.msra.mxu0 0.0
    %395 = vmatpush.msra.mxu0 0.0
    %396 = vmatpush.msra.mxu0 0.0
    %397 = vmatpush.msra.mxu0 0.0
    %398 = vmatpush.msra.mxu0 0.0
    %399 = vmatpush.msra.mxu0 0.0
    %400 = vmatpush.msra.mxu0 0.0
    %401 = vmatpush.msra.mxu0 0.0
    %402 = vmatpush.msra.mxu0 0.0
    %403 = vmatpush.msra.mxu0 0.0
    %404 = vmatpush.msra.mxu0 0.0
    %405 = vmatpush.msra.mxu0 %v358
    %406 = vmatpush.msra.mxu0 %v357
    %407 = vmatpush.msra.mxu0 %v356
    %408 = vmatpush.msra.mxu0 %v355
    %409 = vmatmul.f32.gmra.mxu0 %v381
    %v410 = vpop.f32.mrf.mxu0
    %v411 = vadd.f32 %v361, %v410
    %412 = vmatmul.f32.gmra.mxu0 %v383
    %v413 = vpop.f32.mrf.mxu0
    %v414 = vadd.f32 %v361, %v413
    %415 = vmatmul.f32.gmra.mxu0 %v385
    %v416 = vpop.f32.mrf.mxu0
    %v417 = vadd.f32 %v361, %v416
    %418 = vmatmul.f32.gmra.mxu0 %v387
    %v419 = vpop.f32.mrf.mxu0
    %v420 = vadd.f32 %v361, %v419
    %421 = vmatmul.f32.gmra.mxu0 %v389
    %v422 = vpop.f32.mrf.mxu0
    %v423 = vadd.f32 %v361, %v422
    %424 = vmatmul.f32.gmra.mxu0 %v391
    %v425 = vpop.f32.mrf.mxu0
    %v426 = vadd.f32 %v361, %v425
    %427 = vdwg.mxu0
    %v428 = vmax.f32 %v411, 0.0
    %v429 = vmax.f32 %v414, 0.0
    %v430 = vmax.f32 %v417, 0.0
    %v431 = vmax.f32 %v420, 0.0
    %v432 = vmax.f32 %v423, 0.0
    %v433 = vmax.f32 %v426, 0.0
    %v434 = vxor.u32 %v411, 2147483648
    %v435 = vxor.u32 %v414, 2147483648
    %v436 = vxor.u32 %v417, 2147483648
    %v437 = vxor.u32 %v420, 2147483648
    %v438 = vxor.u32 %v423, 2147483648
    %v439 = vxor.u32 %v426, 2147483648
    %v440 = vmul.f32 %v434, 1.442695
    %v441 = vpow.pop %v440
    %v442 = vmul.f32 %v435, 1.442695
    %v443 = vpow.pop %v442
    %v444 = vmul.f32 %v436, 1.442695
    %v445 = vpow.pop %v444
    %v446 = vmul.f32 %v437, 1.442695
    %v447 = vpow.pop %v446
    %v448 = vmul.f32 %v438, 1.442695
    %v449 = vpow.pop %v448
    %v450 = vmul.f32 %v439, 1.442695
    %v451 = vpow.pop %v450
    %v452 = vadd.f32 %v441, 1.0
    %v453 = vadd.f32 %v443, 1.0
    %v454 = vadd.f32 %v445, 1.0
    %v455 = vadd.f32 %v447, 1.0
    %v456 = vadd.f32 %v449, 1.0
    %v457 = vadd.f32 %v451, 1.0
    %v458 = vrcp.pop %v452
    %v459 = vmul.f32 %v452, %v458
    %v460 = vsub.f32 1.0, %v459
    %v461 = vmul.f32 %v458, %v460
    %v462 = vadd.f32 %v458, %v461
    %vm463 = vweird.f32 %v452
    %vm464 = vweird.f32 %v458
    %vm465 = vmor %vm463, %vm464
    %v466 = vsel %vm465, %v458, %v462
    %v467 = vand.u32 2147483647, %v452
    %vm468 = vcmp.eq.f32.partialorder %v467, 8.507059e+37
    %v469 = vand.u32 %v452, 2147483648
    %v470 = vor.u32 1.1754944e-38, %v469
    %v471 = vsel %vm468, %v470, %v466
    %v472 = vmul.f32 1.0, %v471
    %v473 = vrcp.pop %v453
    %v474 = vmul.f32 %v453, %v473
    %v475 = vsub.f32 1.0, %v474
    %v476 = vmul.f32 %v473, %v475
    %v477 = vadd.f32 %v473, %v476
    %vm478 = vweird.f32 %v453
    %vm479 = vweird.f32 %v473
    %vm480 = vmor %vm478, %vm479
    %v481 = vsel %vm480, %v473, %v477
    %v482 = vand.u32 2147483647, %v453
    %vm483 = vcmp.eq.f32.partialorder %v482, 8.507059e+37
    %v484 = vand.u32 %v453, 2147483648
    %v485 = vor.u32 1.1754944e-38, %v484
    %v486 = vsel %vm483, %v485, %v481
    %v487 = vmul.f32 1.0, %v486
    %v488 = vrcp.pop %v454
    %v489 = vmul.f32 %v454, %v488
    %v490 = vsub.f32 1.0, %v489
    %v491 = vmul.f32 %v488, %v490
    %v492 = vadd.f32 %v488, %v491
    %vm493 = vweird.f32 %v454
    %vm494 = vweird.f32 %v488
    %vm495 = vmor %vm493, %vm494
    %v496 = vsel %vm495, %v488, %v492
    %v497 = vand.u32 2147483647, %v454
    %vm498 = vcmp.eq.f32.partialorder %v497, 8.507059e+37
    %v499 = vand.u32 %v454, 2147483648
    %v500 = vor.u32 1.1754944e-38, %v499
    %v501 = vsel %vm498, %v500, %v496
    %v502 = vmul.f32 1.0, %v501
    %v503 = vrcp.pop %v455
    %v504 = vmul.f32 %v455, %v503
    %v505 = vsub.f32 1.0, %v504
    %v506 = vmul.f32 %v503, %v505
    %v507 = vadd.f32 %v503, %v506
    %vm508 = vweird.f32 %v455
    %vm509 = vweird.f32 %v503
    %vm510 = vmor %vm508, %vm509
    %v511 = vsel %vm510, %v503, %v507
    %v512 = vand.u32 2147483647, %v455
    %vm513 = vcmp.eq.f32.partialorder %v512, 8.507059e+37
    %v514 = vand.u32 %v455, 2147483648
    %v515 = vor.u32 1.1754944e-38, %v514
    %v516 = vsel %vm513, %v515, %v511
    %v517 = vmul.f32 1.0, %v516
    %v518 = vrcp.pop %v456
    %v519 = vmul.f32 %v456, %v518
    %v520 = vsub.f32 1.0, %v519
    %v521 = vmul.f32 %v518, %v520
    %v522 = vadd.f32 %v518, %v521
    %vm523 = vweird.f32 %v456
    %vm524 = vweird.f32 %v518
    %vm525 = vmor %vm523, %vm524
    %v526 = vsel %vm525, %v518, %v522
    %v527 = vand.u32 2147483647, %v456
    %vm528 = vcmp.eq.f32.partialorder %v527, 8.507059e+37
    %v529 = vand.u32 %v456, 2147483648
    %v530 = vor.u32 1.1754944e-38, %v529
    %v531 = vsel %vm528, %v530, %v526
    %v532 = vmul.f32 1.0, %v531
    %v533 = vrcp.pop %v457
    %v534 = vmul.f32 %v457, %v533
    %v535 = vsub.f32 1.0, %v534
    %v536 = vmul.f32 %v533, %v535
    %v537 = vadd.f32 %v533, %v536
    %vm538 = vweird.f32 %v457
    %vm539 = vweird.f32 %v533
    %vm540 = vmor %vm538, %vm539
    %v541 = vsel %vm540, %v533, %v537
    %v542 = vand.u32 2147483647, %v457
    %vm543 = vcmp.eq.f32.partialorder %v542, 8.507059e+37
    %v544 = vand.u32 %v457, 2147483648
    %v545 = vor.u32 1.1754944e-38, %v544
    %v546 = vsel %vm543, %v545, %v541
    %v547 = vmul.f32 1.0, %v546
    %554 = vrot.lane.b32.xlu0 %v428, 32
    %v555 = vpop.permute.xlu0 %554
    %556 = vrot.lane.b32.xlu0 %v429, 32
    %v557 = vpop.permute.xlu0 %556
    %558 = vrot.lane.b32.xlu0 %v430, 32
    %v559 = vpop.permute.xlu0 %558
    %560 = vrot.lane.b32.xlu0 %v431, 32
    %v561 = vpop.permute.xlu0 %560
    %562 = vrot.lane.b32.xlu0 %v432, 32
    %v563 = vpop.permute.xlu0 %562
    %564 = vrot.lane.b32.xlu0 %v433, 32
    %v565 = vpop.permute.xlu0 %564
    %v572 = vmul.f32 %v472, %v555
    %v573 = vmul.f32 %v487, %v557
    %v574 = vmul.f32 %v502, %v559
    %v575 = vmul.f32 %v517, %v561
    %v576 = vmul.f32 %v532, %v563
    %v577 = vmul.f32 %v547, %v565
    %v578 = vsub.f32 1.0, %v472
    %v579 = vsub.f32 1.0, %v487
    %v580 = vsub.f32 1.0, %v502
    %v581 = vsub.f32 1.0, %v517
    %v582 = vsub.f32 1.0, %v532
    %v583 = vsub.f32 1.0, %v547
    %v584 = vmul.f32 %v578, %v349
    %v585 = vmul.f32 %v579, %v350
    %v586 = vmul.f32 %v580, %v351
    %v587 = vmul.f32 %v581, %v352
    %v588 = vmul.f32 %v582, %v353
    %v589 = vmul.f32 %v583, %v354
    %v590 = vadd.f32 %v572, %v584
    %v591 = vadd.f32 %v573, %v585
    %v592 = vadd.f32 %v574, %v586
    %v593 = vadd.f32 %v575, %v587
    %v594 = vadd.f32 %v576, %v588
    %v595 = vadd.f32 %v577, %v589
    %602 = vrot.lane.b32.xlu0 %v590, 96
    %v603 = vpop.permute.xlu0 %602
    %604 = vrot.lane.b32.xlu0 %v591, 96
    %v605 = vpop.permute.xlu0 %604
    %606 = vrot.lane.b32.xlu0 %v592, 96
    %v607 = vpop.permute.xlu0 %606
    %608 = vrot.lane.b32.xlu0 %v593, 96
    %v609 = vpop.permute.xlu0 %608
    %610 = vrot.lane.b32.xlu0 %v594, 96
    %v611 = vpop.permute.xlu0 %610
    %612 = vrot.lane.b32.xlu0 %v595, 96
    %v613 = vpop.permute.xlu0 %612
    %620 = vst.msk [vmem:[%s6] sm:$0xff] %vm115, %v603
    %621 = vst.msk [vmem:[%s6 + $0x8] sm:$0xff] %vm115, %v605
    %622 = vst.msk [vmem:[%s6 + $0x10] sm:$0xff] %vm115, %v607
    %623 = vst.msk [vmem:[%s6 + $0x18] sm:$0xff] %vm115, %v609
    %624 = vst.msk [vmem:[%s6 + $0x20] sm:$0xff] %vm115, %v611
    %625 = vst.msk [vmem:[%s6 + $0x28] sm:$0xff] %vm115, %v613
    // Predicated region
    $region30: #{tpu_custom_call.1} parent=1 // pred_check
      _
    $region31: #{tpu_custom_call.1} parent=1 // pred_check_branch
      %627 = sbr.rel (0) target = $region33
    $region32: #{tpu_custom_call.1} parent=1 // pred_region
      _
    $region33: #{tpu_custom_call.1} parent=1 // pred_fallthru
      _
    // Predicated region
    $region34: #{tpu_custom_call.1} parent=1 // pred_check
      _
    $region35: #{tpu_custom_call.1} parent=1 // pred_check_branch
      %629 = sbr.rel (0) target = $region37
    $region36: #{tpu_custom_call.1} parent=1 // pred_region
      _
    $region37: #{tpu_custom_call.1} parent=1 // pred_fallthru
      _
    %630 = vsyncpa [#allocation3], 1

</llo_original>
